<compile_context>
chip_gen: v7x
topology: tpu7x:2x2x1
jax: 0.10.0
libtpu: 0.0.40
codegen_flags: <defaults>
</compile_context>

<pallas_src>
import functools

import jax
import jax.numpy as jnp
from jax.experimental import pallas as pl
from jax.experimental.pallas import tpu as pltpu


# ------------------------------ helpers --------------------------------------

def _pick_tm(M, target):
    """Largest row tile <= target that divides M and is a multiple of 8 (else M itself)."""
    if M <= target:
        return M
    t = (target // 8) * 8
    for tm in range(t, 7, -8):
        if M % tm == 0:
            return tm
    return M


def bn_fold(gamma, beta, mean, var, conv_bias=None, eps=1e-5):
    """Fold eval-mode BatchNorm (+ optional preceding conv bias) into (scale, bias)."""
    s = gamma / jnp.sqrt(var + eps)
    b = beta - mean * s
    if conv_bias is not None:
        b = b + conv_bias * s
    return s, b


def space_to_depth(x, r):
    """NHWC -> (B*(H/r)*(W/r), r*r*C) non-overlapping patches; column order (a, b, ci)."""
    B, H, W, C = x.shape
    x = x.reshape(B, H // r, r, W // r, r, C).transpose(0, 1, 3, 2, 4, 5)
    return x.reshape(B * (H // r) * (W // r), r * r * C)


# --------------------------- matmul + affine kernel --------------------------

def _mm_affine_kernel(x_ref, w_ref, s_ref, b_ref, o_ref, *, relu):
    y = jnp.dot(x_ref[...], w_ref[...], preferred_element_type=jnp.float32)
    y = y * s_ref[...] + b_ref[...]
    if relu:
        y = jnp.maximum(y, 0.0)
    o_ref[...] = y.astype(o_ref.dtype)


def matmul_affine(x, w, scale, bias, relu=False, out_dtype=jnp.float32, tm_target=1024):
    M, K = x.shape
    _, N = w.shape
    tm = _pick_tm(M, tm_target)
    return pl.pallas_call(
        functools.partial(_mm_affine_kernel, relu=relu),
        out_shape=jax.ShapeDtypeStruct((M, N), out_dtype),
        grid_spec=pltpu.PrefetchScalarGridSpec(
            num_scalar_prefetch=0,
            grid=(M // tm,),
            in_specs=[pl.BlockSpec((tm, K), lambda i: (i, 0)),
                      pl.BlockSpec((K, N), lambda i: (0, 0)),
                      pl.BlockSpec((1, N), lambda i: (0, 0)),
                      pl.BlockSpec((1, N), lambda i: (0, 0))],
            out_specs=pl.BlockSpec((tm, N), lambda i: (i, 0)),
        ),
        compiler_params=pltpu.CompilerParams(dimension_semantics=("parallel",)),
    )(x, w, scale.reshape(1, N), bias.reshape(1, N))


# ---------------- fused 3x3 conv + BN + ReLU (+ optional 2nd affine) ----------

def _conv3x3_kernel(*refs, H, W, C, relu, has_affine2):
    if has_affine2:
        x_ref, w_ref, s_ref, b_ref, s2_ref, b2_ref, o_ref = refs
    else:
        x_ref, w_ref, s_ref, b_ref, o_ref = refs
        s2_ref = b2_ref = None
    # Halo-padded NHWC tile resident in VMEM; build the 9-tap "im2col" entirely in VMEM.
    xv = x_ref[0].astype(jnp.float32)                      # (H+2, W+2, C)
    cols = []
    for kh in range(3):
        for kw in range(3):
            cols.append(xv[kh:kh + H, kw:kw + W, :])       # (H, W, C) shifted view
    patches = jnp.concatenate(cols, axis=-1).reshape(H * W, 9 * C)   # (H*W, 9C)
    y = jnp.dot(patches.astype(jnp.bfloat16), w_ref[...],
                preferred_element_type=jnp.float32)        # (H*W, Cout)
    y = y * s_ref[...] + b_ref[...]                        # folded conv-BN
    if relu:
        y = jnp.maximum(y, 0.0)
    if has_affine2:
        y = y * s2_ref[...] + b2_ref[...]                  # fused norm2
    o_ref[0] = y.reshape(H, W, -1).astype(o_ref.dtype)


def conv3x3_bn_relu(x_pad, w_taps, scale, bias, scale2=None, bias2=None,
                    relu=True, out_dtype=jnp.bfloat16):
    """x_pad: (B, H+2, W+2, C) halo-padded NHWC. w_taps: (9*C, Cout), rows ordered (kh, kw, ci)."""
    B, Hp, Wp, C = x_pad.shape
    H, W = Hp - 2, Wp - 2
    Cout = w_taps.shape[1]
    has2 = scale2 is not None
    in_specs = [
        pl.BlockSpec((1, Hp, Wp, C), lambda b: (b, 0, 0, 0)),
        pl.BlockSpec((9 * C, Cout), lambda b: (0, 0)),
        pl.BlockSpec((1, Cout), lambda b: (0, 0)),
        pl.BlockSpec((1, Cout), lambda b: (0, 0)),
    ]
    args = [x_pad, w_taps, scale.reshape(1, Cout), bias.reshape(1, Cout)]
    if has2:
        in_specs += [pl.BlockSpec((1, Cout), lambda b: (0, 0)),
                     pl.BlockSpec((1, Cout), lambda b: (0, 0))]
        args += [scale2.reshape(1, Cout), bias2.reshape(1, Cout)]
    return pl.pallas_call(
        functools.partial(_conv3x3_kernel, H=H, W=W, C=C, relu=relu, has_affine2=has2),
        out_shape=jax.ShapeDtypeStruct((B, H, W, Cout), out_dtype),
        grid_spec=pltpu.PrefetchScalarGridSpec(
            num_scalar_prefetch=0,
            grid=(B,),
            in_specs=in_specs,
            out_specs=pl.BlockSpec((1, H, W, Cout), lambda b: (b, 0, 0, 0)),
        ),
        compiler_params=pltpu.CompilerParams(dimension_semantics=("parallel",)),
    )(*args)


# ----------------------- fused sr-conv + LayerNorm ----------------------------

def _sr_ln_kernel(pt_ref, w_ref, cb_ref, g_ref, be_ref, o_ref, *, eps):
    y = jnp.dot(pt_ref[...], w_ref[...], preferred_element_type=jnp.float32) + cb_ref[...]
    mu = jnp.mean(y, axis=-1, keepdims=True)
    yc = y - mu
    var = jnp.mean(yc * yc, axis=-1, keepdims=True)
    inv = jax.lax.rsqrt(var + eps)
    o_ref[...] = (yc * inv * g_ref[...] + be_ref[...]).astype(o_ref.dtype)


def sr_conv_layernorm(patches, w_sr, conv_b, gamma, beta, eps=1e-5, tm_target=512):
    """Row-tiled: o = LayerNorm(patches @ w_sr + conv_b) * gamma + beta."""
    M, K = patches.shape
    _, C = w_sr.shape
    tm = _pick_tm(M, tm_target)
    return pl.pallas_call(
        functools.partial(_sr_ln_kernel, eps=eps),
        out_shape=jax.ShapeDtypeStruct((M, C), jnp.bfloat16),
        grid_spec=pltpu.PrefetchScalarGridSpec(
            num_scalar_prefetch=0,
            grid=(M // tm,),
            in_specs=[pl.BlockSpec((tm, K), lambda i: (i, 0)),
                      pl.BlockSpec((K, C), lambda i: (0, 0)),
                      pl.BlockSpec((1, C), lambda i: (0, 0)),
                      pl.BlockSpec((1, C), lambda i: (0, 0)),
                      pl.BlockSpec((1, C), lambda i: (0, 0))],
            out_specs=pl.BlockSpec((tm, C), lambda i: (i, 0)),
        ),
        compiler_params=pltpu.CompilerParams(dimension_semantics=("parallel",)),
    )(patches, w_sr, conv_b.reshape(1, C), gamma.reshape(1, C), beta.reshape(1, C))


# -------- fused attention: q/kv proj + MH softmax + proj + residual ------------

def _attn_fused_kernel(r_ref, xln_ref, wq_ref, wkv_ref, wp_ref, pb_ref, o_ref,
                       *, num_heads, scale):
    r = r_ref[0]                                                      # (tq, C) f32
    q = jnp.dot(r.astype(jnp.bfloat16), wq_ref[...],
                preferred_element_type=jnp.float32)                   # (tq, C)
    kv = jnp.dot(xln_ref[0], wkv_ref[...],
                 preferred_element_type=jnp.float32)                  # (Nk, 2C)
    C = r.shape[-1]
    dh = C // num_heads
    heads = []
    for h in range(num_heads):                                        # heads indexed in-kernel
        qh = q[:, h * dh:(h + 1) * dh].astype(jnp.bfloat16)
        kh = kv[:, h * dh:(h + 1) * dh].astype(jnp.bfloat16)
        vh = kv[:, C + h * dh:C + (h + 1) * dh].astype(jnp.bfloat16)
        s = jax.lax.dot_general(qh, kh, (((1,), (1,)), ((), ())),
                                preferred_element_type=jnp.float32) * scale   # (tq, Nk)
        m = jnp.max(s, axis=-1, keepdims=True)
        p = jnp.exp(s - m)
        l = jnp.sum(p, axis=-1, keepdims=True)
        p = p * pl.reciprocal(l, approx=True)                         # EUP slot
        heads.append(jnp.dot(p.astype(jnp.bfloat16), vh,
                             preferred_element_type=jnp.float32))     # (tq, dh)
    attn = jnp.concatenate(heads, axis=-1)                            # (tq, C)
    out = jnp.dot(attn.astype(jnp.bfloat16), wp_ref[...],
                  preferred_element_type=jnp.float32)
    o_ref[0] = (out + pb_ref[...] + r).astype(o_ref.dtype)            # fused proj bias + residual


def attention_fused(r3, xln3, wq, wkv, wproj, proj_b, num_heads, tq_target=128):
    """r3: (B, N, C) f32 tokens; xln3: (B, Nk, C) bf16 spatially-reduced tokens."""
    B, N, C = r3.shape
    _, Nk, _ = xln3.shape
    tq = _pick_tm(N, tq_target)        # query tiling keeps score tile at (tq, Nk)
    dh = C // num_heads
    return pl.pallas_call(
        functools.partial(_attn_fused_kernel, num_heads=num_heads, scale=dh ** -0.5),
        out_shape=jax.ShapeDtypeStruct((B, N, C), jnp.float32),
        grid_spec=pltpu.PrefetchScalarGridSpec(
            num_scalar_prefetch=0,
            grid=(B, N // tq),
            in_specs=[pl.BlockSpec((1, tq, C), lambda b, qi: (b, qi, 0)),
                      pl.BlockSpec((1, Nk, C), lambda b, qi: (b, 0, 0)),
                      pl.BlockSpec((C, C), lambda b, qi: (0, 0)),
                      pl.BlockSpec((C, 2 * C), lambda b, qi: (0, 0)),
                      pl.BlockSpec((C, C), lambda b, qi: (0, 0)),
                      pl.BlockSpec((1, C), lambda b, qi: (0, 0))],
            out_specs=pl.BlockSpec((1, tq, C), lambda b, qi: (b, qi, 0)),
        ),
        compiler_params=pltpu.CompilerParams(dimension_semantics=("parallel", "parallel")),
    )(r3, xln3, wq, wkv, wproj, proj_b.reshape(1, C))


# ------------------------------- forward --------------------------------------

def up_forward(x1, x2, p, num_heads=4, sr_ratio=4):
    B, C1, H, W = x1.shape
    Cin = C1 + x2.shape[1]
    x = jnp.concatenate([x1, x2], axis=1)                     # (B, Cin, H, W) NCHW
    x = jnp.transpose(x, (0, 2, 3, 1))                        # NHWC
    xt = x.reshape(B * H * W, Cin).astype(jnp.bfloat16)

    # --- up: ConvTranspose2d(Cin, Cin, k=2, s=2) fused with norm1 (BatchNorm, eval) ---
    s1, b1 = bn_fold(p['bn1_g'], p['bn1_b'], p['bn1_m'], p['bn1_v'], conv_bias=p['up_b'])
    w_up = jnp.transpose(p['up_w'], (0, 2, 3, 1)).reshape(Cin, 4 * Cin).astype(jnp.bfloat16)
    y = matmul_affine(xt, w_up, jnp.tile(s1, 4), jnp.tile(b1, 4), out_dtype=jnp.bfloat16)
    # TODO(synk): fold this depth-to-space + halo pad into the up kernel's out_spec (layout-only).
    y = y.reshape(B, H, W, 2, 2, Cin).transpose(0, 1, 3, 2, 4, 5).reshape(B, 2 * H, 2 * W, Cin)
    H2, W2 = 2 * H, 2 * W

    # --- DoubleConv conv1: conv3x3 + BN + ReLU, im2col built in VMEM ---
    Cout = p['dc1_w'].shape[0]
    s, b = bn_fold(p['dc1_bn_g'], p['dc1_bn_b'], p['dc1_bn_m'], p['dc1_bn_v'])
    w1 = jnp.transpose(p['dc1_w'], (2, 3, 1, 0)).reshape(9 * Cin, Cout).astype(jnp.bfloat16)
    xp = jnp.pad(y, ((0, 0), (1, 1), (1, 1), (0, 0)))
    y = conv3x3_bn_relu(xp, w1, s, b, out_dtype=jnp.bfloat16)          # (B, H2, W2, Cout) bf16

    # --- conv2: conv3x3 + BN + ReLU + norm2 fused -> residual r (f32) ---
    s, b = bn_fold(p['dc2_bn_g'], p['dc2_bn_b'], p['dc2_bn_m'], p['dc2_bn_v'])
    s2, b2 = bn_fold(p['bn2_g'], p['bn2_b'], p['bn2_m'], p['bn2_v'])
    w2 = jnp.transpose(p['dc2_w'], (2, 3, 1, 0)).reshape(9 * Cout, Cout).astype(jnp.bfloat16)
    xp = jnp.pad(y, ((0, 0), (1, 1), (1, 1), (0, 0)))
    r = conv3x3_bn_relu(xp, w2, s, b, scale2=s2, bias2=b2, out_dtype=jnp.float32)  # (B,H2,W2,C)

    C = Cout
    N = H2 * W2

    # --- spatial reduction: Conv2d(C, C, k=sr, s=sr) + LayerNorm, fused kernel ---
    patches = space_to_depth(r, sr_ratio).astype(jnp.bfloat16)          # (B*Nk, sr*sr*C)
    w_sr = jnp.transpose(p['sr_w'], (2, 3, 1, 0)).reshape(
        sr_ratio * sr_ratio * C, C).astype(jnp.bfloat16)
    xln = sr_conv_layernorm(patches, w_sr, p['sr_b'], p['ln_g'], p['ln_b'])  # (B*Nk, C) bf16
    Nk = xln.shape[0] // B

    # --- fused attention (+ proj bias + residual add) ---
    out = attention_fused(
        r.reshape(B, N, C), xln.reshape(B, Nk, C),
        p['q_w'].T.astype(jnp.bfloat16), p['kv_w'].T.astype(jnp.bfloat16),
        p['proj_w'].T.astype(jnp.bfloat16), p['proj_b'],
        num_heads=num_heads)                                            # (B, N, C) f32

    # norm3(x) result is discarded in the reference forward -> intentionally skipped.
    return out.reshape(B, H2, W2, C).transpose(0, 3, 1, 2)              # back to NCHW


# -------------------------- deterministic params -------------------------------

def init_params(key, Cin, Cout, sr_ratio):
    ks = iter(jax.random.split(key, 32))

    def w(shape, s=0.1):
        return (jax.random.normal(next(ks), shape) * s).astype(jnp.float32)

    def pos(shape):
        return jax.random.uniform(next(ks), shape, jnp.float32, 0.5, 1.5)

    p = {}
    p['up_w'] = w((Cin, Cin, 2, 2)); p['up_b'] = w((Cin,))
    p['bn1_g'] = pos((Cin,)); p['bn1_b'] = w((Cin,)); p['bn1_m'] = w((Cin,)); p['bn1_v'] = pos((Cin,))
    p['dc1_w'] = w((Cout, Cin, 3, 3))
    p['dc1_bn_g'] = pos((Cout,)); p['dc1_bn_b'] = w((Cout,)); p['dc1_bn_m'] = w((Cout,)); p['dc1_bn_v'] = pos((Cout,))
    p['dc2_w'] = w((Cout, Cout, 3, 3))
    p['dc2_bn_g'] = pos((Cout,)); p['dc2_bn_b'] = w((Cout,)); p['dc2_bn_m'] = w((Cout,)); p['dc2_bn_v'] = pos((Cout,))
    p['bn2_g'] = pos((Cout,)); p['bn2_b'] = w((Cout,)); p['bn2_m'] = w((Cout,)); p['bn2_v'] = pos((Cout,))
    p['q_w'] = w((Cout, Cout))
    p['kv_w'] = w((2 * Cout, Cout))
    p['proj_w'] = w((Cout, Cout)); p['proj_b'] = w((Cout,))
    p['sr_w'] = w((Cout, Cout, sr_ratio, sr_ratio)); p['sr_b'] = w((Cout,))
    p['ln_g'] = pos((Cout,)); p['ln_b'] = w((Cout,))
    return p


if __name__ == "__main__":
    B, C1, C2, H, W = 2, 4, 4, 8, 8
    Cin, Cout, sr = C1 + C2, 16, 4          # Up(in_channels=8, out_channels=16, reduction=4)

    key = jax.random.PRNGKey(0)
    k1, k2, kp = jax.random.split(key, 3)
    x1 = jax.random.normal(k1, (B, C1, H, W), jnp.float32)
    x2 = jax.random.normal(k2, (B, C2, H, W), jnp.float32)
    params = init_params(kp, Cin, Cout, sr)

    out = up_forward(x1, x2, params, num_heads=4, sr_ratio=sr)
    out = jax.block_until_ready(out)

    assert out.shape == (B, Cout, 2 * H, 2 * W), out.shape
    assert bool(jnp.all(jnp.isfinite(out)))
    print("KERNEL_OK")
</pallas_src>

<mosaic_0001>
module attributes {stable_mosaic.version = 11 : i64} {
  func.func @_mm_affine_kernel(%arg0: i32, %arg1: memref<128x8xbf16, #tpu.memory_space<vmem>>, %arg2: memref<8x32xbf16, #tpu.memory_space<vmem>>, %arg3: memref<1x32xf32, #tpu.memory_space<vmem>>, %arg4: memref<1x32xf32, #tpu.memory_space<vmem>>, %arg5: memref<128x32xbf16, #tpu.memory_space<vmem>>) attributes {dimension_semantics = [#tpu.dimension_semantics<parallel>], iteration_bounds = array<i64: 1>, scalar_prefetch = 0 : i64, scratch_operands = 0 : i64, tpu.core_type = #tpu.core_type<tc>, window_params = [{transform_indices = @transform_0, window_bounds = array<i64: 128, 8>}, {pipeline_mode = #tpu.pipeline_mode<synchronous>, transform_indices = @transform_1, window_bounds = array<i64: 8, 32>}, {pipeline_mode = #tpu.pipeline_mode<synchronous>, transform_indices = @transform_2, window_bounds = array<i64: 1, 32>}, {pipeline_mode = #tpu.pipeline_mode<synchronous>, transform_indices = @transform_3, window_bounds = array<i64: 1, 32>}, {transform_indices = @transform_4, window_bounds = array<i64: 128, 32>}]} {
    %c0 = arith.constant 0 : index
    %c0_0 = arith.constant 0 : index
    %0 = vector.load %arg1[%c0, %c0_0] : memref<128x8xbf16, #tpu.memory_space<vmem>>, vector<128x8xbf16>
    %c0_1 = arith.constant 0 : index
    %c0_2 = arith.constant 0 : index
    %1 = vector.load %arg2[%c0_1, %c0_2] : memref<8x32xbf16, #tpu.memory_space<vmem>>, vector<8x32xbf16>
    %cst = arith.constant dense<0.000000e+00> : vector<128x32xf32>
    %2 = tpu.matmul %0, %1, %cst {dimension_numbers = #tpu.dot_dimension_numbers<[1], [0], [0], [1], [0, 0, 1, 1], [], []>} : vector<128x8xbf16>, vector<8x32xbf16>, vector<128x32xf32> -> vector<128x32xf32>
    %c0_3 = arith.constant 0 : index
    %c0_4 = arith.constant 0 : index
    %3 = vector.load %arg3[%c0_3, %c0_4] : memref<1x32xf32, #tpu.memory_space<vmem>>, vector<1x32xf32>
    %4 = vector.broadcast %3 : vector<1x32xf32> to vector<128x32xf32>
    %5 = arith.mulf %2, %4 : vector<128x32xf32>
    %c0_5 = arith.constant 0 : index
    %c0_6 = arith.constant 0 : index
    %6 = vector.load %arg4[%c0_5, %c0_6] : memref<1x32xf32, #tpu.memory_space<vmem>>, vector<1x32xf32>
    %7 = vector.broadcast %6 : vector<1x32xf32> to vector<128x32xf32>
    %8 = arith.addf %5, %7 : vector<128x32xf32>
    %9 = arith.truncf %8 : vector<128x32xf32> to vector<128x32xbf16>
    %c0_7 = arith.constant 0 : index
    %c0_8 = arith.constant 0 : index
    %10 = vector.load %arg5[%c0_7, %c0_8] : memref<128x32xbf16, #tpu.memory_space<vmem>>, vector<128x32xbf16>
    tpu.vector_store %arg5[%c0_7, %c0_8], %9 {strides = array<i32>} : memref<128x32xbf16, #tpu.memory_space<vmem>>, vector<128x32xbf16>,
    return
  }
  func.func @transform_0(%arg0: i32) -> (i32, i32) {
    %c0_i32 = arith.constant 0 : i32
    %c0_i32_0 = arith.constant 0 : i32
    return %arg0, %c0_i32 : i32, i32
  }
  func.func @transform_1(%arg0: i32) -> (i32, i32) {
    %c0_i32 = arith.constant 0 : i32
    %c0_i32_0 = arith.constant 0 : i32
    %c0_i32_1 = arith.constant 0 : i32
    return %c0_i32, %c0_i32_0 : i32, i32
  }
  func.func @transform_2(%arg0: i32) -> (i32, i32) {
    %c0_i32 = arith.constant 0 : i32
    %c0_i32_0 = arith.constant 0 : i32
    %c0_i32_1 = arith.constant 0 : i32
    return %c0_i32, %c0_i32_0 : i32, i32
  }
  func.func @transform_3(%arg0: i32) -> (i32, i32) {
    %c0_i32 = arith.constant 0 : i32
    %c0_i32_0 = arith.constant 0 : i32
    %c0_i32_1 = arith.constant 0 : i32
    return %c0_i32, %c0_i32_0 : i32, i32
  }
  func.func @transform_4(%arg0: i32) -> (i32, i32) {
    %c0_i32 = arith.constant 0 : i32
    %c0_i32_0 = arith.constant 0 : i32
    return %arg0, %c0_i32 : i32, i32
  }
}

</mosaic_0001>

<llo_original>
// kernel: tpu_custom_call.1
$region0: #{tpu_custom_call.1}
  #allocation0 [shape = 'u32[]', space=smem, size = 0x4, offset = 0x4, fixed_abs, tag = 'smem constant byte address 0x4 - core index']
  #allocation1 [shape = 'u32[144,128]{1,0:T(1,128)}', space=vmem, size = 0x12000, scoped, tag = 'internal scratch']
  %s0 = inlined_call_operand.vmem [shape: bf16[128,8], index: 0, kind: input, shape index: {}]
  %s1 = inlined_call_operand.vmem [shape: bf16[8,32], index: 1, kind: input, shape index: {}]
  %s2 = inlined_call_operand.vmem [shape: f32[1,32], index: 2, kind: input, shape index: {}]
  %s3 = inlined_call_operand.vmem [shape: f32[1,32], index: 3, kind: input, shape index: {}]
  %s4 = inlined_call_operand.vmem [shape: bf16[128,32], index: 4, kind: output, shape index: {}]
  %s5 = sld [smem:[#allocation0]]
  $region26: #{tpu_custom_call.1} parent=0
    _
  %s7 = ssub.s32 1, %s5
  %s8 = scalar_select 0, %s7, %s5
  // Predicated region
  $region2: #{tpu_custom_call.1} parent=0 // pred_check
    _
  $region3: #{tpu_custom_call.1} parent=0 // pred_check_branch
    %10 = sbr.rel (0) target = $region5
  $region4: #{tpu_custom_call.1} parent=0 // pred_region
    _
  $region5: #{tpu_custom_call.1} parent=0 // pred_fallthru
    _
  // Predicated region
  $region6: #{tpu_custom_call.1} parent=0 // pred_check
    _
  $region7: #{tpu_custom_call.1} parent=0 // pred_check_branch
    %12 = sbr.rel (0) target = $region9
  $region8: #{tpu_custom_call.1} parent=0 // pred_region
    _
  $region9: #{tpu_custom_call.1} parent=0 // pred_fallthru
    _
  // Predicated region
  $region10: #{tpu_custom_call.1} parent=0 // pred_check
    _
  $region11: #{tpu_custom_call.1} parent=0 // pred_check_branch
    %14 = sbr.rel (0) target = $region13
  $region12: #{tpu_custom_call.1} parent=0 // pred_region
    _
  $region13: #{tpu_custom_call.1} parent=0 // pred_fallthru
    _
  // Predicated region
  $region14: #{tpu_custom_call.1} parent=0 // pred_check
    _
  $region15: #{tpu_custom_call.1} parent=0 // pred_check_branch
    %16 = sbr.rel (0) target = $region17
  $region16: #{tpu_custom_call.1} parent=0 // pred_region
    _
  $region17: #{tpu_custom_call.1} parent=0 // pred_fallthru
    _
  %v18 = vld [vmem:[%s0] sm:$0xf]
  %v19 = vld [vmem:[%s0 + $0x4] sm:$0xf]
  %v20 = vld [vmem:[%s0 + $0x8] sm:$0xf]
  %v21 = vld [vmem:[%s0 + $0xc] sm:$0xf]
  %v22 = vld [vmem:[%s0 + $0x10] sm:$0xf]
  %v23 = vld [vmem:[%s0 + $0x14] sm:$0xf]
  %v24 = vld [vmem:[%s0 + $0x18] sm:$0xf]
  %v25 = vld [vmem:[%s0 + $0x1c] sm:$0xf]
  %v26 = vld [vmem:[%s0 + $0x20] sm:$0xf]
  %v27 = vld [vmem:[%s0 + $0x24] sm:$0xf]
  %v28 = vld [vmem:[%s0 + $0x28] sm:$0xf]
  %v29 = vld [vmem:[%s0 + $0x2c] sm:$0xf]
  %v30 = vld [vmem:[%s0 + $0x30] sm:$0xf]
  %v31 = vld [vmem:[%s0 + $0x34] sm:$0xf]
  %v32 = vld [vmem:[%s0 + $0x38] sm:$0xf]
  %v33 = vld [vmem:[%s0 + $0x3c] sm:$0xf]
  %v34 = vld [vmem:[%s1] sm:$0xf]
  %v51 = vunpack.c.l.b16 %v18
  %v52 = vunpack.c.l.b16 %v19
  %v53 = vunpack.c.l.b16 %v20
  %v54 = vunpack.c.l.b16 %v21
  %v55 = vunpack.c.l.b16 %v22
  %v56 = vunpack.c.l.b16 %v23
  %v57 = vunpack.c.l.b16 %v24
  %v58 = vunpack.c.l.b16 %v25
  %v59 = vunpack.c.l.b16 %v26
  %v60 = vunpack.c.l.b16 %v27
  %v61 = vunpack.c.l.b16 %v28
  %v62 = vunpack.c.l.b16 %v29
  %v63 = vunpack.c.l.b16 %v30
  %v64 = vunpack.c.l.b16 %v31
  %v65 = vunpack.c.l.b16 %v32
  %v66 = vunpack.c.l.b16 %v33
  %v67 = vpack.c.b16 %v52, %v51
  %v68 = vpack.c.b16 %v54, %v53
  %v69 = vpack.c.b16 %v56, %v55
  %v70 = vpack.c.b16 %v58, %v57
  %v71 = vpack.c.b16 %v60, %v59
  %v72 = vpack.c.b16 %v62, %v61
  %v73 = vpack.c.b16 %v64, %v63
  %v74 = vpack.c.b16 %v66, %v65
  %vm75 = vcmask 64512
  %v77 = vsel %vm75, %v67, 0
  %v80 = vsel %vm75, %v68, 0
  %v83 = vsel %vm75, %v69, 0
  %v86 = vsel %vm75, %v70, 0
  %v89 = vsel %vm75, %v71, 0
  %v92 = vsel %vm75, %v72, 0
  %v95 = vsel %vm75, %v73, 0
  %v98 = vsel %vm75, %v74, 0
  %vm100 = vcmask 1043456
  %v102 = vsel %vm100, %v34, 0
  %104 = vmatprep.subr.bf16.mxu0 0
  %105 = vmatpush1.bf16.msra.mxu0 %v102
  %106 = vmatprep.subr.bf16.mxu0 0
  %107 = vmatpush1.bf16.msra.mxu0 0
  %108 = vmatprep.subr.bf16.mxu0 0
  %109 = vmatpush1.bf16.msra.mxu0 0
  %110 = vmatprep.subr.bf16.mxu0 0
  %111 = vmatpush1.bf16.msra.mxu0 0
  %112 = vmatprep.subr.bf16.mxu0 0
  %113 = vmatpush1.bf16.msra.mxu0 0
  %114 = vmatprep.subr.bf16.mxu0 0
  %115 = vmatpush1.bf16.msra.mxu0 0
  %116 = vmatprep.subr.bf16.mxu0 0
  %117 = vmatpush1.bf16.msra.mxu0 0
  %118 = vmatprep.subr.bf16.mxu0 0
  %119 = vmatpush1.bf16.msra.mxu0 0
  %120 = vmatprep.subr.bf16.mxu0 0
  %121 = vmatpush1.bf16.msra.mxu0 0
  %122 = vmatprep.subr.bf16.mxu0 0
  %123 = vmatpush1.bf16.msra.mxu0 0
  %124 = vmatprep.subr.bf16.mxu0 0
  %125 = vmatpush1.bf16.msra.mxu0 0
  %126 = vmatprep.subr.bf16.mxu0 0
  %127 = vmatpush1.bf16.msra.mxu0 0
  %128 = vmatprep.subr.bf16.mxu0 0
  %129 = vmatpush1.bf16.msra.mxu0 0
  %130 = vmatprep.subr.bf16.mxu0 0
  %131 = vmatpush1.bf16.msra.mxu0 0
  %132 = vmatprep.subr.bf16.mxu0 0
  %133 = vmatpush1.bf16.msra.mxu0 0
  %134 = vmatprep.subr.bf16.mxu0 0
  %135 = vmatpush1.bf16.msra.mxu0 0
  %136 = vmatprep.mubr.bf16.mxu0 0
  %137 = vmatmul.mubr.bf16.gmra.mrb[0].mxu0 %v77
  %v138 = vpop.f32.mrb[0].mxu0
  %v139 = vadd.f32 0.0, %v138
  %v140 = vpop.f32.mrb[0].mxu0
  %v141 = vpop.f32.mrb[0].mxu0
  %v142 = vadd.f32 0.0, %v141
  %v143 = vpop.f32.mrb[0].mxu0
  %144 = vmatprep.mubr.bf16.mxu0 0
  %145 = vmatmul.mubr.bf16.gmra.mrb[0].mxu0 %v80
  %v146 = vpop.f32.mrb[0].mxu0
  %v147 = vadd.f32 0.0, %v146
  %v148 = vpop.f32.mrb[0].mxu0
  %v149 = vpop.f32.mrb[0].mxu0
  %v150 = vadd.f32 0.0, %v149
  %v151 = vpop.f32.mrb[0].mxu0
  %152 = vmatprep.mubr.bf16.mxu0 0
  %153 = vmatmul.mubr.bf16.gmra.mrb[0].mxu0 %v83
  %v154 = vpop.f32.mrb[0].mxu0
  %v155 = vadd.f32 0.0, %v154
  %v156 = vpop.f32.mrb[0].mxu0
  %v157 = vpop.f32.mrb[0].mxu0
  %v158 = vadd.f32 0.0, %v157
  %v159 = vpop.f32.mrb[0].mxu0
  %160 = vmatprep.mubr.bf16.mxu0 0
  %161 = vmatmul.mubr.bf16.gmra.mrb[0].mxu0 %v86
  %v162 = vpop.f32.mrb[0].mxu0
  %v163 = vadd.f32 0.0, %v162
  %v164 = vpop.f32.mrb[0].mxu0
  %v165 = vpop.f32.mrb[0].mxu0
  %v166 = vadd.f32 0.0, %v165
  %v167 = vpop.f32.mrb[0].mxu0
  %168 = vmatprep.mubr.bf16.mxu0 0
  %169 = vmatmul.mubr.bf16.gmra.mrb[0].mxu0 %v89
  %v170 = vpop.f32.mrb[0].mxu0
  %v171 = vadd.f32 0.0, %v170
  %v172 = vpop.f32.mrb[0].mxu0
  %v173 = vpop.f32.mrb[0].mxu0
  %v174 = vadd.f32 0.0, %v173
  %v175 = vpop.f32.mrb[0].mxu0
  %176 = vmatprep.mubr.bf16.mxu0 0
  %177 = vmatmul.mubr.bf16.gmra.mrb[0].mxu0 %v92
  %v178 = vpop.f32.mrb[0].mxu0
  %v179 = vadd.f32 0.0, %v178
  %v180 = vpop.f32.mrb[0].mxu0
  %v181 = vpop.f32.mrb[0].mxu0
  %v182 = vadd.f32 0.0, %v181
  %v183 = vpop.f32.mrb[0].mxu0
  %184 = vmatprep.mubr.bf16.mxu0 0
  %185 = vmatmul.mubr.bf16.gmra.mrb[0].mxu0 %v95
  %v186 = vpop.f32.mrb[0].mxu0
  %v187 = vadd.f32 0.0, %v186
  %v188 = vpop.f32.mrb[0].mxu0
  %v189 = vpop.f32.mrb[0].mxu0
  %v190 = vadd.f32 0.0, %v189
  %v191 = vpop.f32.mrb[0].mxu0
  %192 = vmatprep.mubr.bf16.mxu0 0
  %193 = vmatmul.mubr.bf16.gmra.mrb[0].mxu0 %v98
  %v194 = vpop.f32.mrb[0].mxu0
  %v195 = vadd.f32 0.0, %v194
  %v196 = vpop.f32.mrb[0].mxu0
  %v197 = vpop.f32.mrb[0].mxu0
  %v198 = vadd.f32 0.0, %v197
  %v199 = vpop.f32.mrb[0].mxu0
  %200 = vdwg.mxu0
  %v201 = vld [vmem:[%s2] sm:$0x1]
  %v203 = vlaneseq
  %v204 = vshrl.u32 %v203, 7
  %v205 = vsub.s32 0, %v204
  %v206 = vrot.slane %v201, %v205
  %v208 = vmul.f32 %v139, %v206
  %v209 = vmul.f32 %v142, %v206
  %v210 = vmul.f32 %v147, %v206
  %v211 = vmul.f32 %v150, %v206
  %v212 = vmul.f32 %v155, %v206
  %v213 = vmul.f32 %v158, %v206
  %v214 = vmul.f32 %v163, %v206
  %v215 = vmul.f32 %v166, %v206
  %v216 = vmul.f32 %v171, %v206
  %v217 = vmul.f32 %v174, %v206
  %v218 = vmul.f32 %v179, %v206
  %v219 = vmul.f32 %v182, %v206
  %v220 = vmul.f32 %v187, %v206
  %v221 = vmul.f32 %v190, %v206
  %v222 = vmul.f32 %v195, %v206
  %v223 = vmul.f32 %v198, %v206
  %v224 = vld [vmem:[%s3] sm:$0x1]
  %v226 = vlaneseq
  %v227 = vshrl.u32 %v226, 7
  %v228 = vsub.s32 0, %v227
  %v229 = vrot.slane %v224, %v228
  %v231 = vadd.f32 %v208, %v229
  %v232 = vadd.f32 %v209, %v229
  %v233 = vadd.f32 %v210, %v229
  %v234 = vadd.f32 %v211, %v229
  %v235 = vadd.f32 %v212, %v229
  %v236 = vadd.f32 %v213, %v229
  %v237 = vadd.f32 %v214, %v229
  %v238 = vadd.f32 %v215, %v229
  %v239 = vadd.f32 %v216, %v229
  %v240 = vadd.f32 %v217, %v229
  %v241 = vadd.f32 %v218, %v229
  %v242 = vadd.f32 %v219, %v229
  %v243 = vadd.f32 %v220, %v229
  %v244 = vadd.f32 %v221, %v229
  %v245 = vadd.f32 %v222, %v229
  %v246 = vadd.f32 %v223, %v229
  %v247 = vpack.c.bf16 %v232, %v231
  %v248 = vpack.c.bf16 %v234, %v233
  %v249 = vpack.c.bf16 %v236, %v235
  %v250 = vpack.c.bf16 %v238, %v237
  %v251 = vpack.c.bf16 %v240, %v239
  %v252 = vpack.c.bf16 %v242, %v241
  %v253 = vpack.c.bf16 %v244, %v243
  %v254 = vpack.c.bf16 %v246, %v245
  %v263 = vunpack.c.l.b16 %v247
  %v264 = vunpack.c.h.b16 %v247
  %v265 = vunpack.c.l.b16 %v248
  %v266 = vunpack.c.h.b16 %v248
  %v267 = vunpack.c.l.b16 %v249
  %v268 = vunpack.c.h.b16 %v249
  %v269 = vunpack.c.l.b16 %v250
  %v270 = vunpack.c.h.b16 %v250
  %v271 = vunpack.c.l.b16 %v251
  %v272 = vunpack.c.h.b16 %v251
  %v273 = vunpack.c.l.b16 %v252
  %v274 = vunpack.c.h.b16 %v252
  %v275 = vunpack.c.l.b16 %v253
  %v276 = vunpack.c.h.b16 %v253
  %v277 = vunpack.c.l.b16 %v254
  %v278 = vunpack.c.h.b16 %v254
  %v279 = vpack.c.b16 %v263, %v263
  %v280 = vpack.c.b16 %v264, %v264
  %v281 = vpack.c.b16 %v265, %v265
  %v282 = vpack.c.b16 %v266, %v266
  %v283 = vpack.c.b16 %v267, %v267
  %v284 = vpack.c.b16 %v268, %v268
  %v285 = vpack.c.b16 %v269, %v269
  %v286 = vpack.c.b16 %v270, %v270
  %v287 = vpack.c.b16 %v271, %v271
  %v288 = vpack.c.b16 %v272, %v272
  %v289 = vpack.c.b16 %v273, %v273
  %v290 = vpack.c.b16 %v274, %v274
  %v291 = vpack.c.b16 %v275, %v275
  %v292 = vpack.c.b16 %v276, %v276
  %v293 = vpack.c.b16 %v277, %v277
  %v294 = vpack.c.b16 %v278, %v278
  %vm311 = vcmask 257024
  %312 = vst.msk [vmem:[%s4] sm:$0xf] %vm311, %v279
  %313 = vst.msk [vmem:[%s4 + $0x4] sm:$0xf] %vm311, %v280
  %314 = vst.msk [vmem:[%s4 + $0x8] sm:$0xf] %vm311, %v281
  %315 = vst.msk [vmem:[%s4 + $0xc] sm:$0xf] %vm311, %v282
  %316 = vst.msk [vmem:[%s4 + $0x10] sm:$0xf] %vm311, %v283
  %317 = vst.msk [vmem:[%s4 + $0x14] sm:$0xf] %vm311, %v284
  %318 = vst.msk [vmem:[%s4 + $0x18] sm:$0xf] %vm311, %v285
  %319 = vst.msk [vmem:[%s4 + $0x1c] sm:$0xf] %vm311, %v286
  %320 = vst.msk [vmem:[%s4 + $0x20] sm:$0xf] %vm311, %v287
  %321 = vst.msk [vmem:[%s4 + $0x24] sm:$0xf] %vm311, %v288
  %322 = vst.msk [vmem:[%s4 + $0x28] sm:$0xf] %vm311, %v289
  %323 = vst.msk [vmem:[%s4 + $0x2c] sm:$0xf] %vm311, %v290
  %324 = vst.msk [vmem:[%s4 + $0x30] sm:$0xf] %vm311, %v291
  %325 = vst.msk [vmem:[%s4 + $0x34] sm:$0xf] %vm311, %v292
  %326 = vst.msk [vmem:[%s4 + $0x38] sm:$0xf] %vm311, %v293
  %327 = vst.msk [vmem:[%s4 + $0x3c] sm:$0xf] %vm311, %v294
  // Predicated region
  $region18: #{tpu_custom_call.1} parent=0 // pred_check
    _
  $region19: #{tpu_custom_call.1} parent=0 // pred_check_branch
    %329 = sbr.rel (0) target = $region21
  $region20: #{tpu_custom_call.1} parent=0 // pred_region
    _
  $region21: #{tpu_custom_call.1} parent=0 // pred_fallthru
    _
  // Predicated region
  $region22: #{tpu_custom_call.1} parent=0 // pred_check
    _
  $region23: #{tpu_custom_call.1} parent=0 // pred_check_branch
    %331 = sbr.rel (0) target = $region25
  $region24: #{tpu_custom_call.1} parent=0 // pred_region
    _
  $region25: #{tpu_custom_call.1} parent=0 // pred_fallthru
    _

</llo_original>
